<compile_context>
chip_gen: v7x
topology: tpu7x:2x2x1
jax: 0.10.0
libtpu: 0.0.40
codegen_flags: <defaults>
</compile_context>

<pallas_src>
import functools

import jax
import jax.numpy as jnp
from jax.experimental import pallas as pl
from jax.experimental.pallas import tpu as pltpu

# Layer dims (lane-aligned padding only where it keeps intermediates dense).
D_IN = 784
D_H1, D_H2, D_H3 = 256, 128, 64
D_H3_PAD = 128        # fc3 output / fc4 contraction padded with zeros
D_OUT = 10
D_OUT_PAD = 128       # lane-dense output slab; cols >= 10 masked via -1e30 bias
NEG_BIG = -1e30


def _cdiv(a, b):
    return -(-a // b)


def _round_up(n, m):
    return _cdiv(n, m) * m


def _choose_tile_b(B, tile_b):
    """Pick a batch tile: amortize grid overhead, bound padding waste,
    keep >=2 grid steps for big batches (v7x has 2 TensorCores)."""
    sub = 16 if B >= 16 else 8          # bf16 packs 16 rows per sublane register
    tile_b = max(sub, min(tile_b, _round_up(B, sub)))
    n_tiles = _cdiv(B, tile_b)
    if n_tiles == 1 and B >= 256:       # give the second v7x TC something to do
        n_tiles = 2
    tile_b = _round_up(_cdiv(B, n_tiles), sub)   # bound batch-padding waste
    return tile_b, _cdiv(B, tile_b)


def fashion_mlp_kernel(x_ref, w1_ref, b1_ref, w2_ref, b2_ref,
                       w3_ref, b3_ref, w4_ref, b4_ref, o_ref):
    # x arrives f32 straight from HBM; cast to bf16 in-kernel for the MXU.
    x = x_ref[...].astype(jnp.bfloat16)
    # fc1 + relu (dropout == identity in eval mode); f32 accumulate.
    h = jnp.dot(x, w1_ref[...], preferred_element_type=jnp.float32)
    h = jnp.maximum(h + b1_ref[...], 0.0)
    # fc2 + relu
    h = jnp.dot(h.astype(jnp.bfloat16), w2_ref[...],
                preferred_element_type=jnp.float32)
    h = jnp.maximum(h + b2_ref[...], 0.0)
    # fc3 + relu (output padded 64 -> 128 with zero weight cols / zero bias,
    # so padded activations are exactly 0 and drop out of fc4).
    h = jnp.dot(h.astype(jnp.bfloat16), w3_ref[...],
                preferred_element_type=jnp.float32)
    h = jnp.maximum(h + b3_ref[...], 0.0)
    # fc4: output padded to 128 lanes; padded columns carry a -1e30 bias so
    # they are excluded from the max / logsumexp below (wrapper slices [:, :10]).
    logits = jnp.dot(h.astype(jnp.bfloat16), w4_ref[...],
                     preferred_element_type=jnp.float32)
    logits = logits + b4_ref[...]
    # log_softmax over dim=1 (numerically stable)
    m = jnp.max(logits, axis=1, keepdims=True)
    shifted = logits - m
    lse = jnp.log(jnp.sum(jnp.exp(shifted), axis=1, keepdims=True))
    o_ref[...] = (shifted - lse).astype(o_ref.dtype)


def _prepare_padded_params(params):
    """One-time layout prep: bf16 weights, zero-padded fc3/fc4 lanes,
    -1e30 bias on padded output columns."""
    w1 = params["w1"].astype(jnp.bfloat16)                        # (784, 256)
    w2 = params["w2"].astype(jnp.bfloat16)                        # (256, 128)
    w3 = jnp.zeros((D_H2, D_H3_PAD), jnp.bfloat16)
    w3 = w3.at[:, :D_H3].set(params["w3"].astype(jnp.bfloat16))   # (128, 128)
    w4 = jnp.zeros((D_H3_PAD, D_OUT_PAD), jnp.bfloat16)
    w4 = w4.at[:D_H3, :D_OUT].set(params["w4"].astype(jnp.bfloat16))
    b1 = params["b1"].astype(jnp.float32)
    b2 = params["b2"].astype(jnp.float32)
    b3 = jnp.zeros((1, D_H3_PAD), jnp.float32)
    b3 = b3.at[:, :D_H3].set(params["b3"].astype(jnp.float32))
    b4 = jnp.full((1, D_OUT_PAD), NEG_BIG, jnp.float32)
    b4 = b4.at[:, :D_OUT].set(params["b4"].astype(jnp.float32))
    return w1, b1, w2, b2, w3, b3, w4, b4


@functools.partial(jax.jit, static_argnames=("tile_b",))
def fashion_model_forward(x, params, tile_b=1024):
    """x: (B, 784) float32. Returns (B, 10) float32 log-probabilities."""
    B = x.shape[0]
    tile_b, n_tiles = _choose_tile_b(B, tile_b)

    w1, b1, w2, b2, w3, b3, w4, b4 = _prepare_padded_params(params)

    def resident(shape):
        # Weights/biases: same block every grid step -> stay resident in VMEM.
        return pl.BlockSpec(shape, lambda i: (0, 0))

    out = pl.pallas_call(
        fashion_mlp_kernel,
        out_shape=jax.ShapeDtypeStruct((B, D_OUT_PAD), jnp.bfloat16),
        grid=(n_tiles,),
        in_specs=[
            # x tile, pipelined; last block dim == full array dim (784) is legal.
            pl.BlockSpec((tile_b, D_IN), lambda i: (i, 0)),
            resident((D_IN, D_H1)),         resident((1, D_H1)),        # fc1
            resident((D_H1, D_H2)),         resident((1, D_H2)),        # fc2
            resident((D_H2, D_H3_PAD)),     resident((1, D_H3_PAD)),    # fc3 (padded)
            resident((D_H3_PAD, D_OUT_PAD)), resident((1, D_OUT_PAD)),  # fc4 (padded)
        ],
        out_specs=pl.BlockSpec((tile_b, D_OUT_PAD), lambda i: (i, 0)),
        compiler_params=pltpu.CompilerParams(
            dimension_semantics=("parallel",),     # shard batch across v7x's 2 TCs
            vmem_limit_bytes=64 * 1024 * 1024),    # v5e default (16 MiB) is too low
    )(x, w1, b1, w2, b2, w3, b3, w4, b4)

    return out[:, :D_OUT].astype(jnp.float32)


def init_params(key):
    """Deterministic PyTorch-style init: U(-1/sqrt(fan_in), +1/sqrt(fan_in))."""
    dims = [(D_IN, D_H1), (D_H1, D_H2), (D_H2, D_H3), (D_H3, D_OUT)]
    params = {}
    for idx, (fin, fout) in enumerate(dims, start=1):
        key, kw, kb = jax.random.split(key, 3)
        bound = 1.0 / (fin ** 0.5)
        params[f"w{idx}"] = jax.random.uniform(
            kw, (fin, fout), jnp.float32, minval=-bound, maxval=bound)
        params[f"b{idx}"] = jax.random.uniform(
            kb, (1, fout), jnp.float32, minval=-bound, maxval=bound)
    return params


def reference_forward(x, params):
    """Pure-JAX reference with the same bf16-matmul / f32-accumulate recipe."""
    h = x.astype(jnp.bfloat16)
    for idx in (1, 2, 3):
        h = jnp.dot(h, params[f"w{idx}"].astype(jnp.bfloat16),
                    preferred_element_type=jnp.float32) + params[f"b{idx}"]
        h = jnp.maximum(h, 0.0).astype(jnp.bfloat16)
    logits = jnp.dot(h, params["w4"].astype(jnp.bfloat16),
                     preferred_element_type=jnp.float32) + params["b4"]
    return jax.nn.log_softmax(logits, axis=1)


if __name__ == "__main__":
    key = jax.random.PRNGKey(0)
    key, kx = jax.random.split(key)
    B = 8
    x = jax.random.normal(kx, (B, D_IN), dtype=jnp.float32)
    params = init_params(key)

    y = fashion_model_forward(x, params)
    y = jax.block_until_ready(y)

    assert y.shape == (B, D_OUT)
    # log_softmax rows must exp-sum to 1 (bf16 writeback -> looser tolerance)
    row_sums = jnp.sum(jnp.exp(y), axis=1)
    assert jnp.allclose(row_sums, jnp.ones((B,)), atol=2e-2), row_sums
    # and match the pure-JAX bf16/f32 reference
    y_ref = reference_forward(x, params)
    assert jnp.allclose(y, y_ref, atol=5e-2), float(jnp.max(jnp.abs(y - y_ref)))

    print("KERNEL_OK")
</pallas_src>

<mosaic_0001>
module attributes {stable_mosaic.version = 11 : i64} {
  func.func @fashion_mlp_kernel(%arg0: i32, %arg1: memref<8x784xf32, #tpu.memory_space<vmem>>, %arg2: memref<784x256xbf16, #tpu.memory_space<vmem>>, %arg3: memref<1x256xf32, #tpu.memory_space<vmem>>, %arg4: memref<256x128xbf16, #tpu.memory_space<vmem>>, %arg5: memref<1x128xf32, #tpu.memory_space<vmem>>, %arg6: memref<128x128xbf16, #tpu.memory_space<vmem>>, %arg7: memref<1x128xf32, #tpu.memory_space<vmem>>, %arg8: memref<128x128xbf16, #tpu.memory_space<vmem>>, %arg9: memref<1x128xf32, #tpu.memory_space<vmem>>, %arg10: memref<8x128xbf16, #tpu.memory_space<vmem>>) attributes {dimension_semantics = [#tpu.dimension_semantics<parallel>], iteration_bounds = array<i64: 1>, scalar_prefetch = 0 : i64, scratch_operands = 0 : i64, tpu.core_type = #tpu.core_type<tc>, window_params = [{transform_indices = @transform_0, window_bounds = array<i64: 8, 784>}, {pipeline_mode = #tpu.pipeline_mode<synchronous>, transform_indices = @transform_1, window_bounds = array<i64: 784, 256>}, {pipeline_mode = #tpu.pipeline_mode<synchronous>, transform_indices = @transform_2, window_bounds = array<i64: 1, 256>}, {pipeline_mode = #tpu.pipeline_mode<synchronous>, transform_indices = @transform_3, window_bounds = array<i64: 256, 128>}, {pipeline_mode = #tpu.pipeline_mode<synchronous>, transform_indices = @transform_4, window_bounds = array<i64: 1, 128>}, {pipeline_mode = #tpu.pipeline_mode<synchronous>, transform_indices = @transform_5, window_bounds = array<i64: 128, 128>}, {pipeline_mode = #tpu.pipeline_mode<synchronous>, transform_indices = @transform_6, window_bounds = array<i64: 1, 128>}, {pipeline_mode = #tpu.pipeline_mode<synchronous>, transform_indices = @transform_7, window_bounds = array<i64: 128, 128>}, {pipeline_mode = #tpu.pipeline_mode<synchronous>, transform_indices = @transform_8, window_bounds = array<i64: 1, 128>}, {transform_indices = @transform_9, window_bounds = array<i64: 8, 128>}]} {
    %c0 = arith.constant 0 : index
    %c0_0 = arith.constant 0 : index
    %0 = vector.load %arg1[%c0, %c0_0] : memref<8x784xf32, #tpu.memory_space<vmem>>, vector<8x784xf32>
    %1 = arith.truncf %0 : vector<8x784xf32> to vector<8x784xbf16>
    %c0_1 = arith.constant 0 : index
    %c0_2 = arith.constant 0 : index
    %2 = vector.load %arg2[%c0_1, %c0_2] : memref<784x256xbf16, #tpu.memory_space<vmem>>, vector<784x256xbf16>
    %cst = arith.constant dense<0.000000e+00> : vector<8x256xf32>
    %3 = tpu.matmul %1, %2, %cst {dimension_numbers = #tpu.dot_dimension_numbers<[1], [0], [0], [1], [0, 0, 1, 1], [], []>} : vector<8x784xbf16>, vector<784x256xbf16>, vector<8x256xf32> -> vector<8x256xf32>
    %c0_3 = arith.constant 0 : index
    %c0_4 = arith.constant 0 : index
    %4 = vector.load %arg3[%c0_3, %c0_4] : memref<1x256xf32, #tpu.memory_space<vmem>>, vector<1x256xf32>
    %5 = vector.broadcast %4 : vector<1x256xf32> to vector<8x256xf32>
    %6 = arith.addf %3, %5 : vector<8x256xf32>
    %cst_5 = arith.constant 0.000000e+00 : f32
    %7 = vector.broadcast %cst_5 : f32 to vector<8x256xf32>
    %8 = arith.maximumf %6, %7 : vector<8x256xf32>
    %9 = arith.truncf %8 : vector<8x256xf32> to vector<8x256xbf16>
    %c0_6 = arith.constant 0 : index
    %c0_7 = arith.constant 0 : index
    %10 = vector.load %arg4[%c0_6, %c0_7] : memref<256x128xbf16, #tpu.memory_space<vmem>>, vector<256x128xbf16>
    %cst_8 = arith.constant dense<0.000000e+00> : vector<8x128xf32>
    %11 = tpu.matmul %9, %10, %cst_8 {dimension_numbers = #tpu.dot_dimension_numbers<[1], [0], [0], [1], [0, 0, 1, 1], [], []>} : vector<8x256xbf16>, vector<256x128xbf16>, vector<8x128xf32> -> vector<8x128xf32>
    %c0_9 = arith.constant 0 : index
    %c0_10 = arith.constant 0 : index
    %12 = vector.load %arg5[%c0_9, %c0_10] : memref<1x128xf32, #tpu.memory_space<vmem>>, vector<1x128xf32>
    %13 = vector.broadcast %12 : vector<1x128xf32> to vector<8x128xf32>
    %14 = arith.addf %11, %13 : vector<8x128xf32>
    %cst_11 = arith.constant 0.000000e+00 : f32
    %15 = vector.broadcast %cst_11 : f32 to vector<8x128xf32>
    %16 = arith.maximumf %14, %15 : vector<8x128xf32>
    %17 = arith.truncf %16 : vector<8x128xf32> to vector<8x128xbf16>
    %c0_12 = arith.constant 0 : index
    %c0_13 = arith.constant 0 : index
    %18 = vector.load %arg6[%c0_12, %c0_13] : memref<128x128xbf16, #tpu.memory_space<vmem>>, vector<128x128xbf16>
    %cst_14 = arith.constant dense<0.000000e+00> : vector<8x128xf32>
    %19 = tpu.matmul %17, %18, %cst_14 {dimension_numbers = #tpu.dot_dimension_numbers<[1], [0], [0], [1], [0, 0, 1, 1], [], []>} : vector<8x128xbf16>, vector<128x128xbf16>, vector<8x128xf32> -> vector<8x128xf32>
    %c0_15 = arith.constant 0 : index
    %c0_16 = arith.constant 0 : index
    %20 = vector.load %arg7[%c0_15, %c0_16] : memref<1x128xf32, #tpu.memory_space<vmem>>, vector<1x128xf32>
    %21 = vector.broadcast %20 : vector<1x128xf32> to vector<8x128xf32>
    %22 = arith.addf %19, %21 : vector<8x128xf32>
    %cst_17 = arith.constant 0.000000e+00 : f32
    %23 = vector.broadcast %cst_17 : f32 to vector<8x128xf32>
    %24 = arith.maximumf %22, %23 : vector<8x128xf32>
    %25 = arith.truncf %24 : vector<8x128xf32> to vector<8x128xbf16>
    %c0_18 = arith.constant 0 : index
    %c0_19 = arith.constant 0 : index
    %26 = vector.load %arg8[%c0_18, %c0_19] : memref<128x128xbf16, #tpu.memory_space<vmem>>, vector<128x128xbf16>
    %cst_20 = arith.constant dense<0.000000e+00> : vector<8x128xf32>
    %27 = tpu.matmul %25, %26, %cst_20 {dimension_numbers = #tpu.dot_dimension_numbers<[1], [0], [0], [1], [0, 0, 1, 1], [], []>} : vector<8x128xbf16>, vector<128x128xbf16>, vector<8x128xf32> -> vector<8x128xf32>
    %c0_21 = arith.constant 0 : index
    %c0_22 = arith.constant 0 : index
    %28 = vector.load %arg9[%c0_21, %c0_22] : memref<1x128xf32, #tpu.memory_space<vmem>>, vector<1x128xf32>
    %29 = vector.broadcast %28 : vector<1x128xf32> to vector<8x128xf32>
    %30 = arith.addf %27, %29 : vector<8x128xf32>
    %cst_23 = arith.constant dense<0xFF800000> : vector<8xf32>
    %31 = vector.multi_reduction <maximumf>, %30, %cst_23 [1] : vector<8x128xf32> to vector<8xf32>
    %32 = vector.shape_cast %31 : vector<8xf32> to vector<8x1xf32>
    %33 = vector.broadcast %32 : vector<8x1xf32> to vector<8x128xf32>
    %34 = arith.subf %30, %33 : vector<8x128xf32>
    %35 = math.exp %34 : vector<8x128xf32>
    %cst_24 = arith.constant dense<0.000000e+00> : vector<8xf32>
    %36 = vector.multi_reduction <add>, %35, %cst_24 [1] : vector<8x128xf32> to vector<8xf32>
    %37 = vector.shape_cast %36 : vector<8xf32> to vector<8x1xf32>
    %38 = math.log %37 : vector<8x1xf32>
    %39 = vector.broadcast %38 : vector<8x1xf32> to vector<8x128xf32>
    %40 = arith.subf %34, %39 : vector<8x128xf32>
    %41 = arith.truncf %40 : vector<8x128xf32> to vector<8x128xbf16>
    %c0_25 = arith.constant 0 : index
    %c0_26 = arith.constant 0 : index
    %42 = vector.load %arg10[%c0_25, %c0_26] : memref<8x128xbf16, #tpu.memory_space<vmem>>, vector<8x128xbf16>
    tpu.vector_store %arg10[%c0_25, %c0_26], %41 {strides = array<i32>} : memref<8x128xbf16, #tpu.memory_space<vmem>>, vector<8x128xbf16>,
    return
  }
  func.func @transform_0(%arg0: i32) -> (i32, i32) {
    %c0_i32 = arith.constant 0 : i32
    %c0_i32_0 = arith.constant 0 : i32
    return %arg0, %c0_i32 : i32, i32
  }
  func.func @transform_1(%arg0: i32) -> (i32, i32) {
    %c0_i32 = arith.constant 0 : i32
    %c0_i32_0 = arith.constant 0 : i32
    %c0_i32_1 = arith.constant 0 : i32
    return %c0_i32, %c0_i32_0 : i32, i32
  }
  func.func @transform_2(%arg0: i32) -> (i32, i32) {
    %c0_i32 = arith.constant 0 : i32
    %c0_i32_0 = arith.constant 0 : i32
    %c0_i32_1 = arith.constant 0 : i32
    return %c0_i32, %c0_i32_0 : i32, i32
  }
  func.func @transform_3(%arg0: i32) -> (i32, i32) {
    %c0_i32 = arith.constant 0 : i32
    %c0_i32_0 = arith.constant 0 : i32
    %c0_i32_1 = arith.constant 0 : i32
    return %c0_i32, %c0_i32_0 : i32, i32
  }
  func.func @transform_4(%arg0: i32) -> (i32, i32) {
    %c0_i32 = arith.constant 0 : i32
    %c0_i32_0 = arith.constant 0 : i32
    %c0_i32_1 = arith.constant 0 : i32
    return %c0_i32, %c0_i32_0 : i32, i32
  }
  func.func @transform_5(%arg0: i32) -> (i32, i32) {
    %c0_i32 = arith.constant 0 : i32
    %c0_i32_0 = arith.constant 0 : i32
    %c0_i32_1 = arith.constant 0 : i32
    return %c0_i32, %c0_i32_0 : i32, i32
  }
  func.func @transform_6(%arg0: i32) -> (i32, i32) {
    %c0_i32 = arith.constant 0 : i32
    %c0_i32_0 = arith.constant 0 : i32
    %c0_i32_1 = arith.constant 0 : i32
    return %c0_i32, %c0_i32_0 : i32, i32
  }
  func.func @transform_7(%arg0: i32) -> (i32, i32) {
    %c0_i32 = arith.constant 0 : i32
    %c0_i32_0 = arith.constant 0 : i32
    %c0_i32_1 = arith.constant 0 : i32
    return %c0_i32, %c0_i32_0 : i32, i32
  }
  func.func @transform_8(%arg0: i32) -> (i32, i32) {
    %c0_i32 = arith.constant 0 : i32
    %c0_i32_0 = arith.constant 0 : i32
    %c0_i32_1 = arith.constant 0 : i32
    return %c0_i32, %c0_i32_0 : i32, i32
  }
  func.func @transform_9(%arg0: i32) -> (i32, i32) {
    %c0_i32 = arith.constant 0 : i32
    %c0_i32_0 = arith.constant 0 : i32
    return %arg0, %c0_i32 : i32, i32
  }
}

</mosaic_0001>

<llo_original>
// kernel: fashion_model_forward.1
$region0: #{fashion_model_forward.1}
  #allocation0 [shape = 'u32[]', space=smem, size = 0x4, offset = 0x4, fixed_abs, tag = 'smem constant byte address 0x4 - core index']
  #allocation1 [shape = 'u32[144,128]{1,0:T(1,128)}', space=vmem, size = 0x12000, scoped, tag = 'internal scratch']
  %s0 = inlined_call_operand.hbm [shape: f32[8,784], index: 0, kind: input, shape index: {}]
  %s1 = inlined_call_operand.hbm [shape: bf16[784,256], index: 1, kind: input, shape index: {}]
  %s2 = inlined_call_operand.hbm [shape: f32[1,256], index: 2, kind: input, shape index: {}]
  %s3 = inlined_call_operand.hbm [shape: bf16[256,128], index: 3, kind: input, shape index: {}]
  %s4 = inlined_call_operand.hbm [shape: f32[1,128], index: 4, kind: input, shape index: {}]
  %s5 = inlined_call_operand.hbm [shape: bf16[128,128], index: 5, kind: input, shape index: {}]
  %s6 = inlined_call_operand.hbm [shape: f32[1,128], index: 6, kind: input, shape index: {}]
  %s7 = inlined_call_operand.hbm [shape: bf16[128,128], index: 7, kind: input, shape index: {}]
  %s8 = inlined_call_operand.hbm [shape: f32[1,128], index: 8, kind: input, shape index: {}]
  %s9 = inlined_call_operand.hbm [shape: bf16[8,128], index: 9, kind: output, shape index: {}]
  %s10 = sld [smem:[#allocation0]]
  $region82: #{fashion_model_forward.1} parent=0
    _
  %s12 = ssub.s32 1, %s10
  %s13 = scalar_select 0, %s12, %s10
  $region1: #{fashion_model_forward.1} parent=0
    #allocation2 [shape = 'u8[28672]{0}', space=vmem, size = 0x7000, scoped, tag = 'input window, operand 0, single buffered']
    #allocation3 [shape = 's32[1]{0}', space=sflag, size = 0x4, scoped, tag = 'scoped memory for fashion_model_forward.1']
    #allocation4 [shape = 's32[1]{0}', space=sflag, size = 0x4, scoped, tag = 'scoped memory for fashion_model_forward.1']
    #allocation5 [shape = 'u8[401408]{0}', space=vmem, size = 0x62000, scoped, tag = 'input window, operand 1, single buffered']
    #allocation6 [shape = 's32[1]{0}', space=sflag, size = 0x4, scoped, tag = 'scoped memory for fashion_model_forward.1']
    #allocation7 [shape = 'u8[1024]{0}', space=vmem, size = 0x400, scoped, tag = 'input window, operand 2, single buffered']
    #allocation8 [shape = 'u8[65536]{0}', space=vmem, size = 0x10000, scoped, tag = 'input window, operand 3, single buffered']
    #allocation9 [shape = 's32[1]{0}', space=sflag, size = 0x4, scoped, tag = 'scoped memory for fashion_model_forward.1']
    #allocation10 [shape = 'u8[512]{0}', space=vmem, size = 0x400, scoped, tag = 'input window, operand 4, single buffered']
    #allocation11 [shape = 'u8[32768]{0}', space=vmem, size = 0x8000, scoped, tag = 'input window, operand 5, single buffered']
    #allocation12 [shape = 's32[1]{0}', space=sflag, size = 0x4, scoped, tag = 'scoped memory for fashion_model_forward.1']
    #allocation13 [shape = 'u8[512]{0}', space=vmem, size = 0x400, scoped, tag = 'input window, operand 6, single buffered']
    #allocation14 [shape = 'u8[32768]{0}', space=vmem, size = 0x8000, scoped, tag = 'input window, operand 7, single buffered']
    #allocation15 [shape = 's32[1]{0}', space=sflag, size = 0x4, scoped, tag = 'scoped memory for fashion_model_forward.1']
    #allocation16 [shape = 'u8[512]{0}', space=vmem, size = 0x400, scoped, tag = 'input window, operand 8, single buffered']
    #allocation17 [shape = 'u8[2048]{0}', space=vmem, size = 0x800, scoped, tag = 'output window, operand 0, single buffered']
    %14 = vsyncpa [#allocation3], 0
    %15 = vsyncpa [#allocation6], 0
    %16 = vsyncpa [#allocation9], 0
    %17 = vsyncpa [#allocation12], 0
    %18 = vsyncpa [#allocation15], 0
    %19 = vsyncpa [#allocation4], 0
    // Predicated region
    $region2: #{fashion_model_forward.1} parent=1 // pred_check
      _
    $region3: #{fashion_model_forward.1} parent=1 // pred_check_branch
      %21 = sbr.rel (0) target = $region5
    $region4: #{fashion_model_forward.1} parent=1 // pred_region
      %s23 = ssub.s32 896, 896
      %24 = vsyncadd [#allocation3], %s23
      %s26 = sshll.u32 [#allocation2], 4
      %s27 = int_to_ptr.vmem [resolvable:$true] %s26
      %29 = dma.hbm_to_vmem [thread:$0]  %s0, 896, %s27, [#allocation3]
    $region5: #{fashion_model_forward.1} parent=1 // pred_fallthru
      _
    // Predicated region
    $region6: #{fashion_model_forward.1} parent=1 // pred_check
      _
    $region7: #{fashion_model_forward.1} parent=1 // pred_check_branch
      %31 = sbr.rel (0) target = $region9
    $region8: #{fashion_model_forward.1} parent=1 // pred_region
      %s33 = ssub.s32 12544, 12544
      %34 = vsyncadd [#allocation6], %s33
      %s35 = sshll.u32 [#allocation5], 4
      %s36 = int_to_ptr.vmem [resolvable:$true] %s35
      %41 = dma.hbm_to_vmem [thread:$0]  %s1, 12544, %s36, [#allocation6], 128, 128, 8
    $region9: #{fashion_model_forward.1} parent=1 // pred_fallthru
      _
    // Predicated region
    $region10: #{fashion_model_forward.1} parent=1 // pred_check
      _
    $region11: #{fashion_model_forward.1} parent=1 // pred_check_branch
      %43 = sbr.rel (0) target = $region13
    $region12: #{fashion_model_forward.1} parent=1 // pred_region
      %s45 = ssub.s32 32, 32
      %46 = vsyncadd [#allocation6], %s45
      %s48 = sshll.u32 [#allocation7], 4
      %s49 = int_to_ptr.vmem [resolvable:$true] %s48
      %51 = dma.hbm_to_vmem [thread:$0]  %s2, 32, %s49, [#allocation6]
    $region13: #{fashion_model_forward.1} parent=1 // pred_fallthru
      _
    // Predicated region
    $region14: #{fashion_model_forward.1} parent=1 // pred_check
      _
    $region15: #{fashion_model_forward.1} parent=1 // pred_check_branch
      %53 = sbr.rel (0) target = $region17
    $region16: #{fashion_model_forward.1} parent=1 // pred_region
      %s55 = ssub.s32 2048, 2048
      %56 = vsyncadd [#allocation9], %s55
      %s57 = sshll.u32 [#allocation8], 4
      %s58 = int_to_ptr.vmem [resolvable:$true] %s57
      %63 = dma.hbm_to_vmem [thread:$0]  %s3, 2048, %s58, [#allocation9], 64, 64, 4
    $region17: #{fashion_model_forward.1} parent=1 // pred_fallthru
      _
    // Predicated region
    $region18: #{fashion_model_forward.1} parent=1 // pred_check
      _
    $region19: #{fashion_model_forward.1} parent=1 // pred_check_branch
      %65 = sbr.rel (0) target = $region21
    $region20: #{fashion_model_forward.1} parent=1 // pred_region
      %s67 = ssub.s32 16, 16
      %68 = vsyncadd [#allocation9], %s67
      %s70 = sshll.u32 [#allocation10], 4
      %s71 = int_to_ptr.vmem [resolvable:$true] %s70
      %73 = dma.hbm_to_vmem [thread:$0]  %s4, 16, %s71, [#allocation9]
    $region21: #{fashion_model_forward.1} parent=1 // pred_fallthru
      _
    // Predicated region
    $region22: #{fashion_model_forward.1} parent=1 // pred_check
      _
    $region23: #{fashion_model_forward.1} parent=1 // pred_check_branch
      %75 = sbr.rel (0) target = $region25
    $region24: #{fashion_model_forward.1} parent=1 // pred_region
      %s77 = ssub.s32 1024, 1024
      %78 = vsyncadd [#allocation12], %s77
      %s79 = sshll.u32 [#allocation11], 4
      %s80 = int_to_ptr.vmem [resolvable:$true] %s79
      %85 = dma.hbm_to_vmem [thread:$0]  %s5, 1024, %s80, [#allocation12], 64, 64, 4
    $region25: #{fashion_model_forward.1} parent=1 // pred_fallthru
      _
    // Predicated region
    $region26: #{fashion_model_forward.1} parent=1 // pred_check
      _
    $region27: #{fashion_model_forward.1} parent=1 // pred_check_branch
      %87 = sbr.rel (0) target = $region29
    $region28: #{fashion_model_forward.1} parent=1 // pred_region
      %s89 = ssub.s32 16, 16
      %90 = vsyncadd [#allocation12], %s89
      %s92 = sshll.u32 [#allocation13], 4
      %s93 = int_to_ptr.vmem [resolvable:$true] %s92
      %95 = dma.hbm_to_vmem [thread:$0]  %s6, 16, %s93, [#allocation12]
    $region29: #{fashion_model_forward.1} parent=1 // pred_fallthru
      _
    // Predicated region
    $region30: #{fashion_model_forward.1} parent=1 // pred_check
      _
    $region31: #{fashion_model_forward.1} parent=1 // pred_check_branch
      %97 = sbr.rel (0) target = $region33
    $region32: #{fashion_model_forward.1} parent=1 // pred_region
      %s99 = ssub.s32 1024, 1024
      %100 = vsyncadd [#allocation15], %s99
      %s101 = sshll.u32 [#allocation14], 4
      %s102 = int_to_ptr.vmem [resolvable:$true] %s101
      %107 = dma.hbm_to_vmem [thread:$0]  %s7, 1024, %s102, [#allocation15], 64, 64, 4
    $region33: #{fashion_model_forward.1} parent=1 // pred_fallthru
      _
    // Predicated region
    $region34: #{fashion_model_forward.1} parent=1 // pred_check
      _
    $region35: #{fashion_model_forward.1} parent=1 // pred_check_branch
      %109 = sbr.rel (0) target = $region37
    $region36: #{fashion_model_forward.1} parent=1 // pred_region
      %s111 = ssub.s32 16, 16
      %112 = vsyncadd [#allocation15], %s111
      %s114 = sshll.u32 [#allocation16], 4
      %s115 = int_to_ptr.vmem [resolvable:$true] %s114
      %117 = dma.hbm_to_vmem [thread:$0]  %s8, 16, %s115, [#allocation15]
    $region37: #{fashion_model_forward.1} parent=1 // pred_fallthru
      _
    // Predicated region
    $region38: #{fashion_model_forward.1} parent=1 // pred_check
      _
    $region39: #{fashion_model_forward.1} parent=1 // pred_check_branch
      %119 = sbr.rel (0) target = $region41
    $region40: #{fashion_model_forward.1} parent=1 // pred_region
      %120 = dma.done [#allocation3], 896
    $region41: #{fashion_model_forward.1} parent=1 // pred_fallthru
      _
    // Predicated region
    $region42: #{fashion_model_forward.1} parent=1 // pred_check
      _
    $region43: #{fashion_model_forward.1} parent=1 // pred_check_branch
      %122 = sbr.rel (0) target = $region45
    $region44: #{fashion_model_forward.1} parent=1 // pred_region
      %123 = dma.done [#allocation6], 12544
    $region45: #{fashion_model_forward.1} parent=1 // pred_fallthru
      _
    // Predicated region
    $region46: #{fashion_model_forward.1} parent=1 // pred_check
      _
    $region47: #{fashion_model_forward.1} parent=1 // pred_check_branch
      %125 = sbr.rel (0) target = $region49
    $region48: #{fashion_model_forward.1} parent=1 // pred_region
      %126 = dma.done [#allocation6], 32
    $region49: #{fashion_model_forward.1} parent=1 // pred_fallthru
      _
    // Predicated region
    $region50: #{fashion_model_forward.1} parent=1 // pred_check
      _
    $region51: #{fashion_model_forward.1} parent=1 // pred_check_branch
      %128 = sbr.rel (0) target = $region53
    $region52: #{fashion_model_forward.1} parent=1 // pred_region
      %129 = dma.done [#allocation9], 2048
    $region53: #{fashion_model_forward.1} parent=1 // pred_fallthru
      _
    // Predicated region
    $region54: #{fashion_model_forward.1} parent=1 // pred_check
      _
    $region55: #{fashion_model_forward.1} parent=1 // pred_check_branch
      %131 = sbr.rel (0) target = $region57
    $region56: #{fashion_model_forward.1} parent=1 // pred_region
      %132 = dma.done [#allocation9], 16
    $region57: #{fashion_model_forward.1} parent=1 // pred_fallthru
      _
    // Predicated region
    $region58: #{fashion_model_forward.1} parent=1 // pred_check
      _
    $region59: #{fashion_model_forward.1} parent=1 // pred_check_branch
      %134 = sbr.rel (0) target = $region61
    $region60: #{fashion_model_forward.1} parent=1 // pred_region
      %135 = dma.done [#allocation12], 1024
    $region61: #{fashion_model_forward.1} parent=1 // pred_fallthru
      _
    // Predicated region
    $region62: #{fashion_model_forward.1} parent=1 // pred_check
      _
    $region63: #{fashion_model_forward.1} parent=1 // pred_check_branch
      %137 = sbr.rel (0) target = $region65
    $region64: #{fashion_model_forward.1} parent=1 // pred_region
      %138 = dma.done [#allocation12], 16
    $region65: #{fashion_model_forward.1} parent=1 // pred_fallthru
      _
    // Predicated region
    $region66: #{fashion_model_forward.1} parent=1 // pred_check
      _
    $region67: #{fashion_model_forward.1} parent=1 // pred_check_branch
      %140 = sbr.rel (0) target = $region69
    $region68: #{fashion_model_forward.1} parent=1 // pred_region
      %141 = dma.done [#allocation15], 1024
    $region69: #{fashion_model_forward.1} parent=1 // pred_fallthru
      _
    // Predicated region
    $region70: #{fashion_model_forward.1} parent=1 // pred_check
      _
    $region71: #{fashion_model_forward.1} parent=1 // pred_check_branch
      %143 = sbr.rel (0) target = $region73
    $region72: #{fashion_model_forward.1} parent=1 // pred_region
      %144 = dma.done [#allocation15], 16
    $region73: #{fashion_model_forward.1} parent=1 // pred_fallthru
      _
    %v146 = vld [vmem:[#allocation2] sm:$0xff]
    %v147 = vld [vmem:[#allocation2 + $0x8] sm:$0xff]
    %v148 = vld [vmem:[#allocation2 + $0x10] sm:$0xff]
    %v149 = vld [vmem:[#allocation2 + $0x18] sm:$0xff]
    %v150 = vld [vmem:[#allocation2 + $0x20] sm:$0xff]
    %v151 = vld [vmem:[#allocation2 + $0x28] sm:$0xff]
    %v152 = vld [vmem:[#allocation2 + $0x30] sm:$0xff]
    %v153 = vpack.c.bf16 %v146, %v146
    %v154 = vpack.c.bf16 %v147, %v147
    %v155 = vpack.c.bf16 %v148, %v148
    %v156 = vpack.c.bf16 %v149, %v149
    %v157 = vpack.c.bf16 %v150, %v150
    %v158 = vpack.c.bf16 %v151, %v151
    %v159 = vpack.c.bf16 %v152, %v152
    %v160 = vld [vmem:[#allocation5] sm:$0xff]
    %v161 = vld [vmem:[#allocation5 + $0x8] sm:$0xff]
    %v162 = vld [vmem:[#allocation5 + $0x10] sm:$0xff]
    %v163 = vld [vmem:[#allocation5 + $0x18] sm:$0xff]
    %v164 = vld [vmem:[#allocation5 + $0x20] sm:$0xff]
    %v165 = vld [vmem:[#allocation5 + $0x28] sm:$0xff]
    %v166 = vld [vmem:[#allocation5 + $0x30] sm:$0xff]
    %v167 = vld [vmem:[#allocation5 + $0x38] sm:$0xff]
    %v168 = vld [vmem:[#allocation5 + $0x40] sm:$0xff]
    %v169 = vld [vmem:[#allocation5 + $0x48] sm:$0xff]
    %v170 = vld [vmem:[#allocation5 + $0x50] sm:$0xff]
    %v171 = vld [vmem:[#allocation5 + $0x58] sm:$0xff]
    %v172 = vld [vmem:[#allocation5 + $0x60] sm:$0xff]
    %v173 = vld [vmem:[#allocation5 + $0x68] sm:$0xff]
    %v174 = vld [vmem:[#allocation5 + $0x70] sm:$0xff]
    %v175 = vld [vmem:[#allocation5 + $0x78] sm:$0xff]
    %v176 = vld [vmem:[#allocation5 + $0x80] sm:$0xff]
    %v177 = vld [vmem:[#allocation5 + $0x88] sm:$0xff]
    %v178 = vld [vmem:[#allocation5 + $0x90] sm:$0xff]
    %v179 = vld [vmem:[#allocation5 + $0x98] sm:$0xff]
    %v180 = vld [vmem:[#allocation5 + $0xa0] sm:$0xff]
    %v181 = vld [vmem:[#allocation5 + $0xa8] sm:$0xff]
    %v182 = vld [vmem:[#allocation5 + $0xb0] sm:$0xff]
    %v183 = vld [vmem:[#allocation5 + $0xb8] sm:$0xff]
    %v184 = vld [vmem:[#allocation5 + $0xc0] sm:$0xff]
    %v185 = vld [vmem:[#allocation5 + $0xc8] sm:$0xff]
    %v186 = vld [vmem:[#allocation5 + $0xd0] sm:$0xff]
    %v187 = vld [vmem:[#allocation5 + $0xd8] sm:$0xff]
    %v188 = vld [vmem:[#allocation5 + $0xe0] sm:$0xff]
    %v189 = vld [vmem:[#allocation5 + $0xe8] sm:$0xff]
    %v190 = vld [vmem:[#allocation5 + $0xf0] sm:$0xff]
    %v191 = vld [vmem:[#allocation5 + $0xf8] sm:$0xff]
    %v192 = vld [vmem:[#allocation5 + $0x100] sm:$0xff]
    %v193 = vld [vmem:[#allocation5 + $0x108] sm:$0xff]
    %v194 = vld [vmem:[#allocation5 + $0x110] sm:$0xff]
    %v195 = vld [vmem:[#allocation5 + $0x118] sm:$0xff]
    %v196 = vld [vmem:[#allocation5 + $0x120] sm:$0xff]
    %v197 = vld [vmem:[#allocation5 + $0x128] sm:$0xff]
    %v198 = vld [vmem:[#allocation5 + $0x130] sm:$0xff]
    %v199 = vld [vmem:[#allocation5 + $0x138] sm:$0xff]
    %v200 = vld [vmem:[#allocation5 + $0x140] sm:$0xff]
    %v201 = vld [vmem:[#allocation5 + $0x148] sm:$0xff]
    %v202 = vld [vmem:[#allocation5 + $0x150] sm:$0xff]
    %v203 = vld [vmem:[#allocation5 + $0x158] sm:$0xff]
    %v204 = vld [vmem:[#allocation5 + $0x160] sm:$0xff]
    %v205 = vld [vmem:[#allocation5 + $0x168] sm:$0xff]
    %v206 = vld [vmem:[#allocation5 + $0x170] sm:$0xff]
    %v207 = vld [vmem:[#allocation5 + $0x178] sm:$0xff]
    %v208 = vld [vmem:[#allocation5 + $0x180] sm:$0xff]
    %v209 = vld [vmem:[#allocation5 + $0x188] sm:$0xff]
    %v210 = vld [vmem:[#allocation5 + $0x190] sm:$0xff]
    %v211 = vld [vmem:[#allocation5 + $0x198] sm:$0xff]
    %v212 = vld [vmem:[#allocation5 + $0x1a0] sm:$0xff]
    %v213 = vld [vmem:[#allocation5 + $0x1a8] sm:$0xff]
    %v214 = vld [vmem:[#allocation5 + $0x1b0] sm:$0xff]
    %v215 = vld [vmem:[#allocation5 + $0x1b8] sm:$0xff]
    %v216 = vld [vmem:[#allocation5 + $0x1c0] sm:$0xff]
    %v217 = vld [vmem:[#allocation5 + $0x1c8] sm:$0xff]
    %v218 = vld [vmem:[#allocation5 + $0x1d0] sm:$0xff]
    %v219 = vld [vmem:[#allocation5 + $0x1d8] sm:$0xff]
    %v220 = vld [vmem:[#allocation5 + $0x1e0] sm:$0xff]
    %v221 = vld [vmem:[#allocation5 + $0x1e8] sm:$0xff]
    %v222 = vld [vmem:[#allocation5 + $0x1f0] sm:$0xff]
    %v223 = vld [vmem:[#allocation5 + $0x1f8] sm:$0xff]
    %v224 = vld [vmem:[#allocation5 + $0x200] sm:$0xff]
    %v225 = vld [vmem:[#allocation5 + $0x208] sm:$0xff]
    %v226 = vld [vmem:[#allocation5 + $0x210] sm:$0xff]
    %v227 = vld [vmem:[#allocation5 + $0x218] sm:$0xff]
    %v228 = vld [vmem:[#allocation5 + $0x220] sm:$0xff]
    %v229 = vld [vmem:[#allocation5 + $0x228] sm:$0xff]
    %v230 = vld [vmem:[#allocation5 + $0x230] sm:$0xff]
    %v231 = vld [vmem:[#allocation5 + $0x238] sm:$0xff]
    %v232 = vld [vmem:[#allocation5 + $0x240] sm:$0xff]
    %v233 = vld [vmem:[#allocation5 + $0x248] sm:$0xff]
    %v234 = vld [vmem:[#allocation5 + $0x250] sm:$0xff]
    %v235 = vld [vmem:[#allocation5 + $0x258] sm:$0xff]
    %v236 = vld [vmem:[#allocation5 + $0x260] sm:$0xff]
    %v237 = vld [vmem:[#allocation5 + $0x268] sm:$0xff]
    %v238 = vld [vmem:[#allocation5 + $0x270] sm:$0xff]
    %v239 = vld [vmem:[#allocation5 + $0x278] sm:$0xff]
    %v240 = vld [vmem:[#allocation5 + $0x280] sm:$0xff]
    %v241 = vld [vmem:[#allocation5 + $0x288] sm:$0xff]
    %v242 = vld [vmem:[#allocation5 + $0x290] sm:$0xff]
    %v243 = vld [vmem:[#allocation5 + $0x298] sm:$0xff]
    %v244 = vld [vmem:[#allocation5 + $0x2a0] sm:$0xff]
    %v245 = vld [vmem:[#allocation5 + $0x2a8] sm:$0xff]
    %v246 = vld [vmem:[#allocation5 + $0x2b0] sm:$0xff]
    %v247 = vld [vmem:[#allocation5 + $0x2b8] sm:$0xff]
    %v248 = vld [vmem:[#allocation5 + $0x2c0] sm:$0xff]
    %v249 = vld [vmem:[#allocation5 + $0x2c8] sm:$0xff]
    %v250 = vld [vmem:[#allocation5 + $0x2d0] sm:$0xff]
    %v251 = vld [vmem:[#allocation5 + $0x2d8] sm:$0xff]
    %v252 = vld [vmem:[#allocation5 + $0x2e0] sm:$0xff]
    %v253 = vld [vmem:[#allocation5 + $0x2e8] sm:$0xff]
    %v254 = vld [vmem:[#allocation5 + $0x2f0] sm:$0xff]
    %v255 = vld [vmem:[#allocation5 + $0x2f8] sm:$0xff]
    %v256 = vld [vmem:[#allocation5 + $0x300] sm:$0xff]
    %v257 = vld [vmem:[#allocation5 + $0x308] sm:$0xff]
    %v258 = vld [vmem:[#allocation7] sm:$0x3]
    %v260 = vlaneseq
    %v261 = vshrl.u32 %v260, 7
    %v262 = vsub.s32 0, %v261
    %v263 = vrot.slane %v258, %v262
    %v264 = vlaneseq
    %v265 = vshrl.u32 %v264, 7
    %v266 = vsub.s32 1, %v265
    %v267 = vrot.slane %v258, %v266
    %v368 = vunpack.c.l.b16 %v160
    %v369 = vunpack.c.h.b16 %v160
    %v370 = vunpack.c.l.b16 %v161
    %v371 = vunpack.c.h.b16 %v161
    %v372 = vunpack.c.l.b16 %v162
    %v373 = vunpack.c.h.b16 %v162
    %v374 = vunpack.c.l.b16 %v163
    %v375 = vunpack.c.h.b16 %v163
    %v376 = vunpack.c.l.b16 %v164
    %v377 = vunpack.c.h.b16 %v164
    %v378 = vunpack.c.l.b16 %v165
    %v379 = vunpack.c.h.b16 %v165
    %v380 = vunpack.c.l.b16 %v166
    %v381 = vunpack.c.h.b16 %v166
    %v382 = vunpack.c.l.b16 %v167
    %v383 = vunpack.c.h.b16 %v167
    %v384 = vunpack.c.l.b16 %v168
    %v385 = vunpack.c.h.b16 %v168
    %v386 = vunpack.c.l.b16 %v169
    %v387 = vunpack.c.h.b16 %v169
    %v388 = vunpack.c.l.b16 %v170
    %v389 = vunpack.c.h.b16 %v170
    %v390 = vunpack.c.l.b16 %v171
    %v391 = vunpack.c.h.b16 %v171
    %v392 = vunpack.c.l.b16 %v172
    %v393 = vunpack.c.h.b16 %v172
    %v394 = vunpack.c.l.b16 %v173
    %v395 = vunpack.c.h.b16 %v173
    %v396 = vunpack.c.l.b16 %v174
    %v397 = vunpack.c.h.b16 %v174
    %v398 = vunpack.c.l.b16 %v175
    %v399 = vunpack.c.h.b16 %v175
    %v400 = vunpack.c.l.b16 %v176
    %v401 = vunpack.c.h.b16 %v176
    %v402 = vunpack.c.l.b16 %v177
    %v403 = vunpack.c.h.b16 %v177
    %v404 = vunpack.c.l.b16 %v178
    %v405 = vunpack.c.h.b16 %v178
    %v406 = vunpack.c.l.b16 %v179
    %v407 = vunpack.c.h.b16 %v179
    %v408 = vunpack.c.l.b16 %v180
    %v409 = vunpack.c.h.b16 %v180
    %v410 = vunpack.c.l.b16 %v181
    %v411 = vunpack.c.h.b16 %v181
    %v412 = vunpack.c.l.b16 %v182
    %v413 = vunpack.c.h.b16 %v182
    %v414 = vunpack.c.l.b16 %v183
    %v415 = vunpack.c.h.b16 %v183
    %v416 = vunpack.c.l.b16 %v184
    %v417 = vunpack.c.h.b16 %v184
    %v418 = vunpack.c.l.b16 %v185
    %v419 = vunpack.c.h.b16 %v185
    %v420 = vunpack.c.l.b16 %v186
    %v421 = vunpack.c.h.b16 %v186
    %v422 = vunpack.c.l.b16 %v187
    %v423 = vunpack.c.h.b16 %v187
    %v424 = vunpack.c.l.b16 %v188
    %v425 = vunpack.c.h.b16 %v188
    %v426 = vunpack.c.l.b16 %v189
    %v427 = vunpack.c.h.b16 %v189
    %v428 = vunpack.c.l.b16 %v190
    %v429 = vunpack.c.h.b16 %v190
    %v430 = vunpack.c.l.b16 %v191
    %v431 = vunpack.c.h.b16 %v191
    %v432 = vunpack.c.l.b16 %v192
    %v433 = vunpack.c.h.b16 %v192
    %v434 = vunpack.c.l.b16 %v193
    %v435 = vunpack.c.h.b16 %v193
    %v436 = vunpack.c.l.b16 %v194
    %v437 = vunpack.c.h.b16 %v194
    %v438 = vunpack.c.l.b16 %v195
    %v439 = vunpack.c.h.b16 %v195
    %v440 = vunpack.c.l.b16 %v196
    %v441 = vunpack.c.h.b16 %v196
    %v442 = vunpack.c.l.b16 %v197
    %v443 = vunpack.c.h.b16 %v197
    %v444 = vunpack.c.l.b16 %v198
    %v445 = vunpack.c.h.b16 %v198
    %v446 = vunpack.c.l.b16 %v199
    %v447 = vunpack.c.h.b16 %v199
    %v448 = vunpack.c.l.b16 %v200
    %v449 = vunpack.c.h.b16 %v200
    %v450 = vunpack.c.l.b16 %v201
    %v451 = vunpack.c.h.b16 %v201
    %v452 = vunpack.c.l.b16 %v202
    %v453 = vunpack.c.h.b16 %v202
    %v454 = vunpack.c.l.b16 %v203
    %v455 = vunpack.c.h.b16 %v203
    %v456 = vunpack.c.l.b16 %v204
    %v457 = vunpack.c.h.b16 %v204
    %v458 = vunpack.c.l.b16 %v205
    %v459 = vunpack.c.h.b16 %v205
    %v460 = vunpack.c.l.b16 %v206
    %v461 = vunpack.c.h.b16 %v206
    %v462 = vunpack.c.l.b16 %v207
    %v463 = vunpack.c.h.b16 %v207
    %v464 = vunpack.c.l.b16 %v208
    %v465 = vunpack.c.h.b16 %v208
    %v466 = vunpack.c.l.b16 %v209
    %v467 = vunpack.c.h.b16 %v209
    %v468 = vunpack.c.l.b16 %v210
    %v469 = vunpack.c.h.b16 %v210
    %v470 = vunpack.c.l.b16 %v211
    %v471 = vunpack.c.h.b16 %v211
    %v472 = vunpack.c.l.b16 %v212
    %v473 = vunpack.c.h.b16 %v212
    %v474 = vunpack.c.l.b16 %v213
    %v475 = vunpack.c.h.b16 %v213
    %v476 = vunpack.c.l.b16 %v214
    %v477 = vunpack.c.h.b16 %v214
    %v478 = vunpack.c.l.b16 %v215
    %v479 = vunpack.c.h.b16 %v215
    %v480 = vunpack.c.l.b16 %v216
    %v481 = vunpack.c.h.b16 %v216
    %v482 = vunpack.c.l.b16 %v217
    %v483 = vunpack.c.h.b16 %v217
    %v484 = vunpack.c.l.b16 %v218
    %v485 = vunpack.c.h.b16 %v218
    %v486 = vunpack.c.l.b16 %v219
    %v487 = vunpack.c.h.b16 %v219
    %v488 = vunpack.c.l.b16 %v220
    %v489 = vunpack.c.h.b16 %v220
    %v490 = vunpack.c.l.b16 %v221
    %v491 = vunpack.c.h.b16 %v221
    %v492 = vunpack.c.l.b16 %v222
    %v493 = vunpack.c.h.b16 %v222
    %v494 = vunpack.c.l.b16 %v223
    %v495 = vunpack.c.h.b16 %v223
    %v496 = vunpack.c.l.b16 %v224
    %v497 = vunpack.c.h.b16 %v224
    %v498 = vunpack.c.l.b16 %v225
    %v499 = vunpack.c.h.b16 %v225
    %v500 = vunpack.c.l.b16 %v226
    %v501 = vunpack.c.h.b16 %v226
    %v502 = vunpack.c.l.b16 %v227
    %v503 = vunpack.c.h.b16 %v227
    %v504 = vunpack.c.l.b16 %v228
    %v505 = vunpack.c.h.b16 %v228
    %v506 = vunpack.c.l.b16 %v229
    %v507 = vunpack.c.h.b16 %v229
    %v508 = vunpack.c.l.b16 %v230
    %v509 = vunpack.c.h.b16 %v230
    %v510 = vunpack.c.l.b16 %v231
    %v511 = vunpack.c.h.b16 %v231
    %v512 = vunpack.c.l.b16 %v232
    %v513 = vunpack.c.h.b16 %v232
    %v514 = vunpack.c.l.b16 %v233
    %v515 = vunpack.c.h.b16 %v233
    %v516 = vunpack.c.l.b16 %v234
    %v517 = vunpack.c.h.b16 %v234
    %v518 = vunpack.c.l.b16 %v235
    %v519 = vunpack.c.h.b16 %v235
    %v520 = vunpack.c.l.b16 %v236
    %v521 = vunpack.c.h.b16 %v236
    %v522 = vunpack.c.l.b16 %v237
    %v523 = vunpack.c.h.b16 %v237
    %v524 = vunpack.c.l.b16 %v238
    %v525 = vunpack.c.h.b16 %v238
    %v526 = vunpack.c.l.b16 %v239
    %v527 = vunpack.c.h.b16 %v239
    %v528 = vunpack.c.l.b16 %v240
    %v529 = vunpack.c.h.b16 %v240
    %v530 = vunpack.c.l.b16 %v241
    %v531 = vunpack.c.h.b16 %v241
    %v532 = vunpack.c.l.b16 %v242
    %v533 = vunpack.c.h.b16 %v242
    %v534 = vunpack.c.l.b16 %v243
    %v535 = vunpack.c.h.b16 %v243
    %v536 = vunpack.c.l.b16 %v244
    %v537 = vunpack.c.h.b16 %v244
    %v538 = vunpack.c.l.b16 %v245
    %v539 = vunpack.c.h.b16 %v245
    %v540 = vunpack.c.l.b16 %v246
    %v541 = vunpack.c.h.b16 %v246
    %v542 = vunpack.c.l.b16 %v247
    %v543 = vunpack.c.h.b16 %v247
    %v544 = vunpack.c.l.b16 %v248
    %v545 = vunpack.c.h.b16 %v248
    %v546 = vunpack.c.l.b16 %v249
    %v547 = vunpack.c.h.b16 %v249
    %v548 = vunpack.c.l.b16 %v250
    %v549 = vunpack.c.h.b16 %v250
    %v550 = vunpack.c.l.b16 %v251
    %v551 = vunpack.c.h.b16 %v251
    %v552 = vunpack.c.l.b16 %v252
    %v553 = vunpack.c.h.b16 %v252
    %v554 = vunpack.c.l.b16 %v253
    %v555 = vunpack.c.h.b16 %v253
    %v556 = vunpack.c.l.b16 %v254
    %v557 = vunpack.c.h.b16 %v254
    %v558 = vunpack.c.l.b16 %v255
    %v559 = vunpack.c.h.b16 %v255
    %v560 = vunpack.c.l.b16 %v256
    %v561 = vunpack.c.h.b16 %v256
    %v562 = vunpack.c.l.b16 %v257
    %v563 = vunpack.c.h.b16 %v257
    %v564 = vpack.c.b16 %v370, %v368
    %v565 = vpack.c.b16 %v371, %v369
    %v566 = vpack.c.b16 %v374, %v372
    %v567 = vpack.c.b16 %v375, %v373
    %v568 = vpack.c.b16 %v378, %v376
    %v569 = vpack.c.b16 %v379, %v377
    %v570 = vpack.c.b16 %v382, %v380
    %v571 = vpack.c.b16 %v383, %v381
    %v572 = vpack.c.b16 %v386, %v384
    %v573 = vpack.c.b16 %v387, %v385
    %v574 = vpack.c.b16 %v390, %v388
    %v575 = vpack.c.b16 %v391, %v389
    %v576 = vpack.c.b16 %v394, %v392
    %v577 = vpack.c.b16 %v395, %v393
    %v578 = vpack.c.b16 %v398, %v396
    %v579 = vpack.c.b16 %v399, %v397
    %v580 = vpack.c.b16 %v402, %v400
    %v581 = vpack.c.b16 %v403, %v401
    %v582 = vpack.c.b16 %v406, %v404
    %v583 = vpack.c.b16 %v407, %v405
    %v584 = vpack.c.b16 %v410, %v408
    %v585 = vpack.c.b16 %v411, %v409
    %v586 = vpack.c.b16 %v414, %v412
    %v587 = vpack.c.b16 %v415, %v413
    %v588 = vpack.c.b16 %v418, %v416
    %v589 = vpack.c.b16 %v419, %v417
    %v590 = vpack.c.b16 %v422, %v420
    %v591 = vpack.c.b16 %v423, %v421
    %v592 = vpack.c.b16 %v426, %v424
    %v593 = vpack.c.b16 %v427, %v425
    %v594 = vpack.c.b16 %v430, %v428
    %v595 = vpack.c.b16 %v431, %v429
    %v596 = vpack.c.b16 %v434, %v432
    %v597 = vpack.c.b16 %v435, %v433
    %v598 = vpack.c.b16 %v438, %v436
    %v599 = vpack.c.b16 %v439, %v437
    %v600 = vpack.c.b16 %v442, %v440
    %v601 = vpack.c.b16 %v443, %v441
    %v602 = vpack.c.b16 %v446, %v444
    %v603 = vpack.c.b16 %v447, %v445
    %v604 = vpack.c.b16 %v450, %v448
    %v605 = vpack.c.b16 %v451, %v449
    %v606 = vpack.c.b16 %v454, %v452
    %v607 = vpack.c.b16 %v455, %v453
    %v608 = vpack.c.b16 %v458, %v456
    %v609 = vpack.c.b16 %v459, %v457
    %v610 = vpack.c.b16 %v462, %v460
    %v611 = vpack.c.b16 %v463, %v461
    %v612 = vpack.c.b16 %v466, %v464
    %v613 = vpack.c.b16 %v467, %v465
    %v614 = vpack.c.b16 %v470, %v468
    %v615 = vpack.c.b16 %v471, %v469
    %v616 = vpack.c.b16 %v474, %v472
    %v617 = vpack.c.b16 %v475, %v473
    %v618 = vpack.c.b16 %v478, %v476
    %v619 = vpack.c.b16 %v479, %v477
    %v620 = vpack.c.b16 %v482, %v480
    %v621 = vpack.c.b16 %v483, %v481
    %v622 = vpack.c.b16 %v486, %v484
    %v623 = vpack.c.b16 %v487, %v485
    %v624 = vpack.c.b16 %v490, %v488
    %v625 = vpack.c.b16 %v491, %v489
    %v626 = vpack.c.b16 %v494, %v492
    %v627 = vpack.c.b16 %v495, %v493
    %v628 = vpack.c.b16 %v498, %v496
    %v629 = vpack.c.b16 %v499, %v497
    %v630 = vpack.c.b16 %v502, %v500
    %v631 = vpack.c.b16 %v503, %v501
    %v632 = vpack.c.b16 %v506, %v504
    %v633 = vpack.c.b16 %v507, %v505
    %v634 = vpack.c.b16 %v510, %v508
    %v635 = vpack.c.b16 %v511, %v509
    %v636 = vpack.c.b16 %v514, %v512
    %v637 = vpack.c.b16 %v515, %v513
    %v638 = vpack.c.b16 %v518, %v516
    %v639 = vpack.c.b16 %v519, %v517
    %v640 = vpack.c.b16 %v522, %v520
    %v641 = vpack.c.b16 %v523, %v521
    %v642 = vpack.c.b16 %v526, %v524
    %v643 = vpack.c.b16 %v527, %v525
    %v644 = vpack.c.b16 %v530, %v528
    %v645 = vpack.c.b16 %v531, %v529
    %v646 = vpack.c.b16 %v534, %v532
    %v647 = vpack.c.b16 %v535, %v533
    %v648 = vpack.c.b16 %v538, %v536
    %v649 = vpack.c.b16 %v539, %v537
    %v650 = vpack.c.b16 %v542, %v540
    %v651 = vpack.c.b16 %v543, %v541
    %v652 = vpack.c.b16 %v546, %v544
    %v653 = vpack.c.b16 %v547, %v545
    %v654 = vpack.c.b16 %v550, %v548
    %v655 = vpack.c.b16 %v551, %v549
    %v656 = vpack.c.b16 %v554, %v552
    %v657 = vpack.c.b16 %v555, %v553
    %v658 = vpack.c.b16 %v558, %v556
    %v659 = vpack.c.b16 %v559, %v557
    %v660 = vpack.c.b16 %v562, %v560
    %v661 = vpack.c.b16 %v563, %v561
    %vm760 = vcmask 130048
    %v762 = vsel %vm760, %v159, 0
    %764 = vmatprep.subr.bf16.mxu0 %v565
    %765 = vmatpush1.bf16.msra.mxu0 %v564
    %766 = vmatprep.subr.bf16.mxu0 %v567
    %767 = vmatpush1.bf16.msra.mxu0 %v566
    %768 = vmatprep.subr.bf16.mxu0 %v569
    %769 = vmatpush1.bf16.msra.mxu0 %v568
    %770 = vmatprep.subr.bf16.mxu0 %v571
    %771 = vmatpush1.bf16.msra.mxu0 %v570
    %772 = vmatprep.subr.bf16.mxu0 %v573
    %773 = vmatpush1.bf16.msra.mxu0 %v572
    %774 = vmatprep.subr.bf16.mxu0 %v575
    %775 = vmatpush1.bf16.msra.mxu0 %v574
    %776 = vmatprep.subr.bf16.mxu0 %v577
    %777 = vmatpush1.bf16.msra.mxu0 %v576
    %778 = vmatprep.subr.bf16.mxu0 %v579
    %779 = vmatpush1.bf16.msra.mxu0 %v578
    %780 = vmatprep.subr.bf16.mxu0 %v581
    %781 = vmatpush1.bf16.msra.mxu0 %v580
    %782 = vmatprep.subr.bf16.mxu0 %v583
    %783 = vmatpush1.bf16.msra.mxu0 %v582
    %784 = vmatprep.subr.bf16.mxu0 %v585
    %785 = vmatpush1.bf16.msra.mxu0 %v584
    %786 = vmatprep.subr.bf16.mxu0 %v587
    %787 = vmatpush1.bf16.msra.mxu0 %v586
    %788 = vmatprep.subr.bf16.mxu0 %v589
    %789 = vmatpush1.bf16.msra.mxu0 %v588
    %790 = vmatprep.subr.bf16.mxu0 %v591
    %791 = vmatpush1.bf16.msra.mxu0 %v590
    %792 = vmatprep.subr.bf16.mxu0 %v593
    %793 = vmatpush1.bf16.msra.mxu0 %v592
    %794 = vmatprep.subr.bf16.mxu0 %v595
    %795 = vmatpush1.bf16.msra.mxu0 %v594
    %796 = vmatprep.mubr.bf16.mxu0 %v154
    %797 = vmatmul.mubr.bf16.gmra.mrb[0].mxu0 %v153
    %v798 = vpop.f32.mrb[0].mxu0
    %v799 = vadd.f32 %v263, %v798
    %v800 = vpop.f32.mrb[0].mxu0
    %v801 = vadd.f32 %v267, %v800
    %v802 = vpop.f32.mrb[0].mxu0
    %v803 = vpop.f32.mrb[0].mxu0
    %804 = vdwg.mxu0
    %805 = vmatprep.subr.bf16.mxu0 %v597
    %806 = vmatpush1.bf16.msra.mxu0 %v596
    %807 = vmatprep.subr.bf16.mxu0 %v599
    %808 = vmatpush1.bf16.msra.mxu0 %v598
    %809 = vmatprep.subr.bf16.mxu0 %v601
    %810 = vmatpush1.bf16.msra.mxu0 %v600
    %811 = vmatprep.subr.bf16.mxu0 %v603
    %812 = vmatpush1.bf16.msra.mxu0 %v602
    %813 = vmatprep.subr.bf16.mxu0 %v605
    %814 = vmatpush1.bf16.msra.mxu0 %v604
    %815 = vmatprep.subr.bf16.mxu0 %v607
    %816 = vmatpush1.bf16.msra.mxu0 %v606
    %817 = vmatprep.subr.bf16.mxu0 %v609
    %818 = vmatpush1.bf16.msra.mxu0 %v608
    %819 = vmatprep.subr.bf16.mxu0 %v611
    %820 = vmatpush1.bf16.msra.mxu0 %v610
    %821 = vmatprep.subr.bf16.mxu0 %v613
    %822 = vmatpush1.bf16.msra.mxu0 %v612
    %823 = vmatprep.subr.bf16.mxu0 %v615
    %824 = vmatpush1.bf16.msra.mxu0 %v614
    %825 = vmatprep.subr.bf16.mxu0 %v617
    %826 = vmatpush1.bf16.msra.mxu0 %v616
    %827 = vmatprep.subr.bf16.mxu0 %v619
    %828 = vmatpush1.bf16.msra.mxu0 %v618
    %829 = vmatprep.subr.bf16.mxu0 %v621
    %830 = vmatpush1.bf16.msra.mxu0 %v620
    %831 = vmatprep.subr.bf16.mxu0 %v623
    %832 = vmatpush1.bf16.msra.mxu0 %v622
    %833 = vmatprep.subr.bf16.mxu0 %v625
    %834 = vmatpush1.bf16.msra.mxu0 %v624
    %835 = vmatprep.subr.bf16.mxu0 %v627
    %836 = vmatpush1.bf16.msra.mxu0 %v626
    %837 = vmatprep.mubr.bf16.mxu0 %v156
    %838 = vmatmul.mubr.bf16.gmra.mrb[0].mxu0 %v155
    %v839 = vpop.f32.mrb[0].mxu0
    %v840 = vadd.f32 %v799, %v839
    %v841 = vpop.f32.mrb[0].mxu0
    %v842 = vadd.f32 %v801, %v841
    %v843 = vpop.f32.mrb[0].mxu0
    %v844 = vpop.f32.mrb[0].mxu0
    %845 = vdwg.mxu0
    %846 = vmatprep.subr.bf16.mxu0 %v629
    %847 = vmatpush1.bf16.msra.mxu0 %v628
    %848 = vmatprep.subr.bf16.mxu0 %v631
    %849 = vmatpush1.bf16.msra.mxu0 %v630
    %850 = vmatprep.subr.bf16.mxu0 %v633
    %851 = vmatpush1.bf16.msra.mxu0 %v632
    %852 = vmatprep.subr.bf16.mxu0 %v635
    %853 = vmatpush1.bf16.msra.mxu0 %v634
    %854 = vmatprep.subr.bf16.mxu0 %v637
    %855 = vmatpush1.bf16.msra.mxu0 %v636
    %856 = vmatprep.subr.bf16.mxu0 %v639
    %857 = vmatpush1.bf16.msra.mxu0 %v638
    %858 = vmatprep.subr.bf16.mxu0 %v641
    %859 = vmatpush1.bf16.msra.mxu0 %v640
    %860 = vmatprep.subr.bf16.mxu0 %v643
    %861 = vmatpush1.bf16.msra.mxu0 %v642
    %862 = vmatprep.subr.bf16.mxu0 %v645
    %863 = vmatpush1.bf16.msra.mxu0 %v644
    %864 = vmatprep.subr.bf16.mxu0 %v647
    %865 = vmatpush1.bf16.msra.mxu0 %v646
    %866 = vmatprep.subr.bf16.mxu0 %v649
    %867 = vmatpush1.bf16.msra.mxu0 %v648
    %868 = vmatprep.subr.bf16.mxu0 %v651
    %869 = vmatpush1.bf16.msra.mxu0 %v650
    %870 = vmatprep.subr.bf16.mxu0 %v653
    %871 = vmatpush1.bf16.msra.mxu0 %v652
    %872 = vmatprep.subr.bf16.mxu0 %v655
    %873 = vmatpush1.bf16.msra.mxu0 %v654
    %874 = vmatprep.subr.bf16.mxu0 %v657
    %875 = vmatpush1.bf16.msra.mxu0 %v656
    %876 = vmatprep.subr.bf16.mxu0 %v659
    %877 = vmatpush1.bf16.msra.mxu0 %v658
    %878 = vmatprep.mubr.bf16.mxu0 %v158
    %879 = vmatmul.mubr.bf16.gmra.mrb[0].mxu0 %v157
    %v880 = vpop.f32.mrb[0].mxu0
    %v881 = vadd.f32 %v840, %v880
    %v882 = vpop.f32.mrb[0].mxu0
    %v883 = vadd.f32 %v842, %v882
    %v884 = vpop.f32.mrb[0].mxu0
    %v885 = vpop.f32.mrb[0].mxu0
    %886 = vdwg.mxu0
    %887 = vmatprep.subr.bf16.mxu0 %v661
    %888 = vmatpush1.bf16.msra.mxu0 %v660
    %889 = vmatprep.subr.bf16.mxu0 0
    %890 = vmatpush1.bf16.msra.mxu0 0
    %891 = vmatprep.subr.bf16.mxu0 0
    %892 = vmatpush1.bf16.msra.mxu0 0
    %893 = vmatprep.subr.bf16.mxu0 0
    %894 = vmatpush1.bf16.msra.mxu0 0
    %895 = vmatprep.subr.bf16.mxu0 0
    %896 = vmatpush1.bf16.msra.mxu0 0
    %897 = vmatprep.subr.bf16.mxu0 0
    %898 = vmatpush1.bf16.msra.mxu0 0
    %899 = vmatprep.subr.bf16.mxu0 0
    %900 = vmatpush1.bf16.msra.mxu0 0
    %901 = vmatprep.subr.bf16.mxu0 0
    %902 = vmatpush1.bf16.msra.mxu0 0
    %903 = vmatprep.subr.bf16.mxu0 0
    %904 = vmatpush1.bf16.msra.mxu0 0
    %905 = vmatprep.subr.bf16.mxu0 0
    %906 = vmatpush1.bf16.msra.mxu0 0
    %907 = vmatprep.subr.bf16.mxu0 0
    %908 = vmatpush1.bf16.msra.mxu0 0
    %909 = vmatprep.subr.bf16.mxu0 0
    %910 = vmatpush1.bf16.msra.mxu0 0
    %911 = vmatprep.subr.bf16.mxu0 0
    %912 = vmatpush1.bf16.msra.mxu0 0
    %913 = vmatprep.subr.bf16.mxu0 0
    %914 = vmatpush1.bf16.msra.mxu0 0
    %915 = vmatprep.subr.bf16.mxu0 0
    %916 = vmatpush1.bf16.msra.mxu0 0
    %917 = vmatprep.subr.bf16.mxu0 0
    %918 = vmatpush1.bf16.msra.mxu0 0
    %919 = vmatprep.mubr.bf16.mxu0 0
    %920 = vmatmul.mubr.bf16.gmra.mrb[0].mxu0 %v762
    %v921 = vpop.f32.mrb[0].mxu0
    %v922 = vadd.f32 %v881, %v921
    %v923 = vpop.f32.mrb[0].mxu0
    %v924 = vadd.f32 %v883, %v923
    %v925 = vpop.f32.mrb[0].mxu0
    %v926 = vpop.f32.mrb[0].mxu0
    %927 = vdwg.mxu0
    %v928 = vmax.f32 %v922, 0.0
    %v929 = vmax.f32 %v924, 0.0
    %v930 = vpack.c.bf16 %v928, %v928
    %v931 = vpack.c.bf16 %v929, %v929
    %v932 = vld [vmem:[#allocation8] sm:$0xf]
    %v933 = vld [vmem:[#allocation8 + $0x4] sm:$0xf]
    %v934 = vld [vmem:[#allocation8 + $0x8] sm:$0xf]
    %v935 = vld [vmem:[#allocation8 + $0xc] sm:$0xf]
    %v936 = vld [vmem:[#allocation8 + $0x10] sm:$0xf]
    %v937 = vld [vmem:[#allocation8 + $0x14] sm:$0xf]
    %v938 = vld [vmem:[#allocation8 + $0x18] sm:$0xf]
    %v939 = vld [vmem:[#allocation8 + $0x1c] sm:$0xf]
    %v940 = vld [vmem:[#allocation8 + $0x20] sm:$0xf]
    %v941 = vld [vmem:[#allocation8 + $0x24] sm:$0xf]
    %v942 = vld [vmem:[#allocation8 + $0x28] sm:$0xf]
    %v943 = vld [vmem:[#allocation8 + $0x2c] sm:$0xf]
    %v944 = vld [vmem:[#allocation8 + $0x30] sm:$0xf]
    %v945 = vld [vmem:[#allocation8 + $0x34] sm:$0xf]
    %v946 = vld [vmem:[#allocation8 + $0x38] sm:$0xf]
    %v947 = vld [vmem:[#allocation8 + $0x3c] sm:$0xf]
    %v948 = vld [vmem:[#allocation8 + $0x40] sm:$0xf]
    %v949 = vld [vmem:[#allocation8 + $0x44] sm:$0xf]
    %v950 = vld [vmem:[#allocation8 + $0x48] sm:$0xf]
    %v951 = vld [vmem:[#allocation8 + $0x4c] sm:$0xf]
    %v952 = vld [vmem:[#allocation8 + $0x50] sm:$0xf]
    %v953 = vld [vmem:[#allocation8 + $0x54] sm:$0xf]
    %v954 = vld [vmem:[#allocation8 + $0x58] sm:$0xf]
    %v955 = vld [vmem:[#allocation8 + $0x5c] sm:$0xf]
    %v956 = vld [vmem:[#allocation8 + $0x60] sm:$0xf]
    %v957 = vld [vmem:[#allocation8 + $0x64] sm:$0xf]
    %v958 = vld [vmem:[#allocation8 + $0x68] sm:$0xf]
    %v959 = vld [vmem:[#allocation8 + $0x6c] sm:$0xf]
    %v960 = vld [vmem:[#allocation8 + $0x70] sm:$0xf]
    %v961 = vld [vmem:[#allocation8 + $0x74] sm:$0xf]
    %v962 = vld [vmem:[#allocation8 + $0x78] sm:$0xf]
    %v963 = vld [vmem:[#allocation8 + $0x7c] sm:$0xf]
    %v964 = vld [vmem:[#allocation10] sm:$0x1]
    %v966 = vlaneseq
    %v967 = vshrl.u32 %v966, 7
    %v968 = vsub.s32 0, %v967
    %v969 = vrot.slane %v964, %v968
    %v1003 = vunpack.c.l.b16 %v932
    %v1004 = vunpack.c.l.b16 %v933
    %v1005 = vunpack.c.l.b16 %v934
    %v1006 = vunpack.c.l.b16 %v935
    %v1007 = vunpack.c.l.b16 %v936
    %v1008 = vunpack.c.l.b16 %v937
    %v1009 = vunpack.c.l.b16 %v938
    %v1010 = vunpack.c.l.b16 %v939
    %v1011 = vunpack.c.l.b16 %v940
    %v1012 = vunpack.c.l.b16 %v941
    %v1013 = vunpack.c.l.b16 %v942
    %v1014 = vunpack.c.l.b16 %v943
    %v1015 = vunpack.c.l.b16 %v944
    %v1016 = vunpack.c.l.b16 %v945
    %v1017 = vunpack.c.l.b16 %v946
    %v1018 = vunpack.c.l.b16 %v947
    %v1019 = vunpack.c.l.b16 %v948
    %v1020 = vunpack.c.l.b16 %v949
    %v1021 = vunpack.c.l.b16 %v950
    %v1022 = vunpack.c.l.b16 %v951
    %v1023 = vunpack.c.l.b16 %v952
    %v1024 = vunpack.c.l.b16 %v953
    %v1025 = vunpack.c.l.b16 %v954
    %v1026 = vunpack.c.l.b16 %v955
    %v1027 = vunpack.c.l.b16 %v956
    %v1028 = vunpack.c.l.b16 %v957
    %v1029 = vunpack.c.l.b16 %v958
    %v1030 = vunpack.c.l.b16 %v959
    %v1031 = vunpack.c.l.b16 %v960
    %v1032 = vunpack.c.l.b16 %v961
    %v1033 = vunpack.c.l.b16 %v962
    %v1034 = vunpack.c.l.b16 %v963
    %v1035 = vpack.c.b16 %v1004, %v1003
    %v1036 = vpack.c.b16 %v1006, %v1005
    %v1037 = vpack.c.b16 %v1008, %v1007
    %v1038 = vpack.c.b16 %v1010, %v1009
    %v1039 = vpack.c.b16 %v1012, %v1011
    %v1040 = vpack.c.b16 %v1014, %v1013
    %v1041 = vpack.c.b16 %v1016, %v1015
    %v1042 = vpack.c.b16 %v1018, %v1017
    %v1043 = vpack.c.b16 %v1020, %v1019
    %v1044 = vpack.c.b16 %v1022, %v1021
    %v1045 = vpack.c.b16 %v1024, %v1023
    %v1046 = vpack.c.b16 %v1026, %v1025
    %v1047 = vpack.c.b16 %v1028, %v1027
    %v1048 = vpack.c.b16 %v1030, %v1029
    %v1049 = vpack.c.b16 %v1032, %v1031
    %v1050 = vpack.c.b16 %v1034, %v1033
    %1067 = vmatprep.subr.bf16.mxu0 0
    %1068 = vmatpush1.bf16.msra.mxu0 %v1035
    %1069 = vmatprep.subr.bf16.mxu0 0
    %1070 = vmatpush1.bf16.msra.mxu0 %v1036
    %1071 = vmatprep.subr.bf16.mxu0 0
    %1072 = vmatpush1.bf16.msra.mxu0 %v1037
    %1073 = vmatprep.subr.bf16.mxu0 0
    %1074 = vmatpush1.bf16.msra.mxu0 %v1038
    %1075 = vmatprep.subr.bf16.mxu0 0
    %1076 = vmatpush1.bf16.msra.mxu0 %v1039
    %1077 = vmatprep.subr.bf16.mxu0 0
    %1078 = vmatpush1.bf16.msra.mxu0 %v1040
    %1079 = vmatprep.subr.bf16.mxu0 0
    %1080 = vmatpush1.bf16.msra.mxu0 %v1041
    %1081 = vmatprep.subr.bf16.mxu0 0
    %1082 = vmatpush1.bf16.msra.mxu0 %v1042
    %1083 = vmatprep.subr.bf16.mxu0 0
    %1084 = vmatpush1.bf16.msra.mxu0 %v1043
    %1085 = vmatprep.subr.bf16.mxu0 0
    %1086 = vmatpush1.bf16.msra.mxu0 %v1044
    %1087 = vmatprep.subr.bf16.mxu0 0
    %1088 = vmatpush1.bf16.msra.mxu0 %v1045
    %1089 = vmatprep.subr.bf16.mxu0 0
    %1090 = vmatpush1.bf16.msra.mxu0 %v1046
    %1091 = vmatprep.subr.bf16.mxu0 0
    %1092 = vmatpush1.bf16.msra.mxu0 %v1047
    %1093 = vmatprep.subr.bf16.mxu0 0
    %1094 = vmatpush1.bf16.msra.mxu0 %v1048
    %1095 = vmatprep.subr.bf16.mxu0 0
    %1096 = vmatpush1.bf16.msra.mxu0 %v1049
    %1097 = vmatprep.subr.bf16.mxu0 0
    %1098 = vmatpush1.bf16.msra.mxu0 %v1050
    %1099 = vmatprep.mubr.bf16.mxu0 %v931
    %1100 = vmatmul.mubr.bf16.gmra.mrb[0].mxu0 %v930
    %v1101 = vpop.f32.mrb[0].mxu0
    %v1102 = vadd.f32 %v969, %v1101
    %v1103 = vpop.f32.mrb[0].mxu0
    %v1104 = vpop.f32.mrb[0].mxu0
    %v1105 = vpop.f32.mrb[0].mxu0
    %1106 = vdwg.mxu0
    %v1107 = vmax.f32 %v1102, 0.0
    %v1108 = vpack.c.bf16 %v1107, %v1107
    %v1109 = vld [vmem:[#allocation11] sm:$0xf]
    %v1110 = vld [vmem:[#allocation11 + $0x4] sm:$0xf]
    %v1111 = vld [vmem:[#allocation11 + $0x8] sm:$0xf]
    %v1112 = vld [vmem:[#allocation11 + $0xc] sm:$0xf]
    %v1113 = vld [vmem:[#allocation11 + $0x10] sm:$0xf]
    %v1114 = vld [vmem:[#allocation11 + $0x14] sm:$0xf]
    %v1115 = vld [vmem:[#allocation11 + $0x18] sm:$0xf]
    %v1116 = vld [vmem:[#allocation11 + $0x1c] sm:$0xf]
    %v1117 = vld [vmem:[#allocation11 + $0x20] sm:$0xf]
    %v1118 = vld [vmem:[#allocation11 + $0x24] sm:$0xf]
    %v1119 = vld [vmem:[#allocation11 + $0x28] sm:$0xf]
    %v1120 = vld [vmem:[#allocation11 + $0x2c] sm:$0xf]
    %v1121 = vld [vmem:[#allocation11 + $0x30] sm:$0xf]
    %v1122 = vld [vmem:[#allocation11 + $0x34] sm:$0xf]
    %v1123 = vld [vmem:[#allocation11 + $0x38] sm:$0xf]
    %v1124 = vld [vmem:[#allocation11 + $0x3c] sm:$0xf]
    %v1125 = vld [vmem:[#allocation13] sm:$0x1]
    %v1127 = vlaneseq
    %v1128 = vshrl.u32 %v1127, 7
    %v1129 = vsub.s32 0, %v1128
    %v1130 = vrot.slane %v1125, %v1129
    %v1148 = vunpack.c.l.b16 %v1109
    %v1149 = vunpack.c.l.b16 %v1110
    %v1150 = vunpack.c.l.b16 %v1111
    %v1151 = vunpack.c.l.b16 %v1112
    %v1152 = vunpack.c.l.b16 %v1113
    %v1153 = vunpack.c.l.b16 %v1114
    %v1154 = vunpack.c.l.b16 %v1115
    %v1155 = vunpack.c.l.b16 %v1116
    %v1156 = vunpack.c.l.b16 %v1117
    %v1157 = vunpack.c.l.b16 %v1118
    %v1158 = vunpack.c.l.b16 %v1119
    %v1159 = vunpack.c.l.b16 %v1120
    %v1160 = vunpack.c.l.b16 %v1121
    %v1161 = vunpack.c.l.b16 %v1122
    %v1162 = vunpack.c.l.b16 %v1123
    %v1163 = vunpack.c.l.b16 %v1124
    %v1164 = vpack.c.b16 %v1149, %v1148
    %v1165 = vpack.c.b16 %v1151, %v1150
    %v1166 = vpack.c.b16 %v1153, %v1152
    %v1167 = vpack.c.b16 %v1155, %v1154
    %v1168 = vpack.c.b16 %v1157, %v1156
    %v1169 = vpack.c.b16 %v1159, %v1158
    %v1170 = vpack.c.b16 %v1161, %v1160
    %v1171 = vpack.c.b16 %v1163, %v1162
    %1180 = vmatprep.subr.bf16.mxu0 0
    %1181 = vmatpush1.bf16.msra.mxu0 %v1164
    %1182 = vmatprep.subr.bf16.mxu0 0
    %1183 = vmatpush1.bf16.msra.mxu0 %v1165
    %1184 = vmatprep.subr.bf16.mxu0 0
    %1185 = vmatpush1.bf16.msra.mxu0 %v1166
    %1186 = vmatprep.subr.bf16.mxu0 0
    %1187 = vmatpush1.bf16.msra.mxu0 %v1167
    %1188 = vmatprep.subr.bf16.mxu0 0
    %1189 = vmatpush1.bf16.msra.mxu0 %v1168
    %1190 = vmatprep.subr.bf16.mxu0 0
    %1191 = vmatpush1.bf16.msra.mxu0 %v1169
    %1192 = vmatprep.subr.bf16.mxu0 0
    %1193 = vmatpush1.bf16.msra.mxu0 %v1170
    %1194 = vmatprep.subr.bf16.mxu0 0
    %1195 = vmatpush1.bf16.msra.mxu0 %v1171
    %1196 = vmatprep.subr.bf16.mxu0 0
    %1197 = vmatpush1.bf16.msra.mxu0 0
    %1198 = vmatprep.subr.bf16.mxu0 0
    %1199 = vmatpush1.bf16.msra.mxu0 0
    %1200 = vmatprep.subr.bf16.mxu0 0
    %1201 = vmatpush1.bf16.msra.mxu0 0
    %1202 = vmatprep.subr.bf16.mxu0 0
    %1203 = vmatpush1.bf16.msra.mxu0 0
    %1204 = vmatprep.subr.bf16.mxu0 0
    %1205 = vmatpush1.bf16.msra.mxu0 0
    %1206 = vmatprep.subr.bf16.mxu0 0
    %1207 = vmatpush1.bf16.msra.mxu0 0
    %1208 = vmatprep.subr.bf16.mxu0 0
    %1209 = vmatpush1.bf16.msra.mxu0 0
    %1210 = vmatprep.subr.bf16.mxu0 0
    %1211 = vmatpush1.bf16.msra.mxu0 0
    %1212 = vmatprep.mubr.bf16.mxu0 0
    %1213 = vmatmul.mubr.bf16.gmra.mrb[0].mxu0 %v1108
    %v1214 = vpop.f32.mrb[0].mxu0
    %v1215 = vadd.f32 %v1130, %v1214
    %v1216 = vpop.f32.mrb[0].mxu0
    %v1217 = vpop.f32.mrb[0].mxu0
    %v1218 = vpop.f32.mrb[0].mxu0
    %1219 = vdwg.mxu0
    %v1220 = vmax.f32 %v1215, 0.0
    %v1221 = vpack.c.bf16 %v1220, %v1220
    %v1222 = vld [vmem:[#allocation14] sm:$0xf]
    %v1223 = vld [vmem:[#allocation14 + $0x4] sm:$0xf]
    %v1224 = vld [vmem:[#allocation14 + $0x8] sm:$0xf]
    %v1225 = vld [vmem:[#allocation14 + $0xc] sm:$0xf]
    %v1226 = vld [vmem:[#allocation14 + $0x10] sm:$0xf]
    %v1227 = vld [vmem:[#allocation14 + $0x14] sm:$0xf]
    %v1228 = vld [vmem:[#allocation14 + $0x18] sm:$0xf]
    %v1229 = vld [vmem:[#allocation14 + $0x1c] sm:$0xf]
    %v1230 = vld [vmem:[#allocation14 + $0x20] sm:$0xf]
    %v1231 = vld [vmem:[#allocation14 + $0x24] sm:$0xf]
    %v1232 = vld [vmem:[#allocation14 + $0x28] sm:$0xf]
    %v1233 = vld [vmem:[#allocation14 + $0x2c] sm:$0xf]
    %v1234 = vld [vmem:[#allocation14 + $0x30] sm:$0xf]
    %v1235 = vld [vmem:[#allocation14 + $0x34] sm:$0xf]
    %v1236 = vld [vmem:[#allocation14 + $0x38] sm:$0xf]
    %v1237 = vld [vmem:[#allocation14 + $0x3c] sm:$0xf]
    %v1238 = vld [vmem:[#allocation16] sm:$0x1]
    %v1240 = vlaneseq
    %v1241 = vshrl.u32 %v1240, 7
    %v1242 = vsub.s32 0, %v1241
    %v1243 = vrot.slane %v1238, %v1242
    %v1261 = vunpack.c.l.b16 %v1222
    %v1262 = vunpack.c.l.b16 %v1223
    %v1263 = vunpack.c.l.b16 %v1224
    %v1264 = vunpack.c.l.b16 %v1225
    %v1265 = vunpack.c.l.b16 %v1226
    %v1266 = vunpack.c.l.b16 %v1227
    %v1267 = vunpack.c.l.b16 %v1228
    %v1268 = vunpack.c.l.b16 %v1229
    %v1269 = vunpack.c.l.b16 %v1230
    %v1270 = vunpack.c.l.b16 %v1231
    %v1271 = vunpack.c.l.b16 %v1232
    %v1272 = vunpack.c.l.b16 %v1233
    %v1273 = vunpack.c.l.b16 %v1234
    %v1274 = vunpack.c.l.b16 %v1235
    %v1275 = vunpack.c.l.b16 %v1236
    %v1276 = vunpack.c.l.b16 %v1237
    %v1277 = vpack.c.b16 %v1262, %v1261
    %v1278 = vpack.c.b16 %v1264, %v1263
    %v1279 = vpack.c.b16 %v1266, %v1265
    %v1280 = vpack.c.b16 %v1268, %v1267
    %v1281 = vpack.c.b16 %v1270, %v1269
    %v1282 = vpack.c.b16 %v1272, %v1271
    %v1283 = vpack.c.b16 %v1274, %v1273
    %v1284 = vpack.c.b16 %v1276, %v1275
    %1293 = vmatprep.subr.bf16.mxu0 0
    %1294 = vmatpush1.bf16.msra.mxu0 %v1277
    %1295 = vmatprep.subr.bf16.mxu0 0
    %1296 = vmatpush1.bf16.msra.mxu0 %v1278
    %1297 = vmatprep.subr.bf16.mxu0 0
    %1298 = vmatpush1.bf16.msra.mxu0 %v1279
    %1299 = vmatprep.subr.bf16.mxu0 0
    %1300 = vmatpush1.bf16.msra.mxu0 %v1280
    %1301 = vmatprep.subr.bf16.mxu0 0
    %1302 = vmatpush1.bf16.msra.mxu0 %v1281
    %1303 = vmatprep.subr.bf16.mxu0 0
    %1304 = vmatpush1.bf16.msra.mxu0 %v1282
    %1305 = vmatprep.subr.bf16.mxu0 0
    %1306 = vmatpush1.bf16.msra.mxu0 %v1283
    %1307 = vmatprep.subr.bf16.mxu0 0
    %1308 = vmatpush1.bf16.msra.mxu0 %v1284
    %1309 = vmatprep.subr.bf16.mxu0 0
    %1310 = vmatpush1.bf16.msra.mxu0 0
    %1311 = vmatprep.subr.bf16.mxu0 0
    %1312 = vmatpush1.bf16.msra.mxu0 0
    %1313 = vmatprep.subr.bf16.mxu0 0
    %1314 = vmatpush1.bf16.msra.mxu0 0
    %1315 = vmatprep.subr.bf16.mxu0 0
    %1316 = vmatpush1.bf16.msra.mxu0 0
    %1317 = vmatprep.subr.bf16.mxu0 0
    %1318 = vmatpush1.bf16.msra.mxu0 0
    %1319 = vmatprep.subr.bf16.mxu0 0
    %1320 = vmatpush1.bf16.msra.mxu0 0
    %1321 = vmatprep.subr.bf16.mxu0 0
    %1322 = vmatpush1.bf16.msra.mxu0 0
    %1323 = vmatprep.subr.bf16.mxu0 0
    %1324 = vmatpush1.bf16.msra.mxu0 0
    %1325 = vmatprep.mubr.bf16.mxu0 0
    %1326 = vmatmul.mubr.bf16.gmra.mrb[0].mxu0 %v1221
    %v1327 = vpop.f32.mrb[0].mxu0
    %v1328 = vadd.f32 %v1243, %v1327
    %v1329 = vpop.f32.mrb[0].mxu0
    %v1330 = vpop.f32.mrb[0].mxu0
    %v1331 = vpop.f32.mrb[0].mxu0
    %1332 = vdwg.mxu0
    %1333 = vmax.xlane.f32.xlu0 %v1328
    %v1334 = vpop.xlane.xlu0 %1333
    %v1335 = vsub.f32 %v1328, %v1334
    %v1336 = vmul.f32 %v1335, 1.442695
    %v1337 = vpow.pop %v1336
    %1338 = vadd.xlane.f32.xlu0 %v1337
    %v1339 = vpop.xlane.xlu0 %1338
    %v1340 = vlog2.pop %v1339
    %v1341 = vmul.f32 %v1340, 0.6931472
    %v1342 = vsub.f32 %v1335, %v1341
    %v1343 = vpack.c.bf16 %v1342, %v1342
    %1344 = vst [vmem:[#allocation17] sm:$0xf] %v1343
    // Predicated region
    $region74: #{fashion_model_forward.1} parent=1 // pred_check
      _
    $region75: #{fashion_model_forward.1} parent=1 // pred_check_branch
      %1346 = sbr.rel (0) target = $region77
    $region76: #{fashion_model_forward.1} parent=1 // pred_region
      %s1348 = ssub.s32 64, 64
      %1349 = vsyncadd [#allocation4], %s1348
      %s1351 = sshll.u32 [#allocation17], 4
      %s1352 = int_to_ptr.vmem [resolvable:$true] %s1351
      %1354 = dma.vmem_to_hbm [thread:$0]  %s1352, 64, %s9, [#allocation4]
    $region77: #{fashion_model_forward.1} parent=1 // pred_fallthru
      _
    // Predicated region
    $region78: #{fashion_model_forward.1} parent=1 // pred_check
      _
    $region79: #{fashion_model_forward.1} parent=1 // pred_check_branch
      %1356 = sbr.rel (0) target = $region81
    $region80: #{fashion_model_forward.1} parent=1 // pred_region
      %1357 = dma.done [#allocation4], 64
    $region81: #{fashion_model_forward.1} parent=1 // pred_fallthru
      _
    %1358 = vsyncpa [#allocation3], 1
    %1359 = vsyncpa [#allocation6], 1
    %1360 = vsyncpa [#allocation9], 1
    %1361 = vsyncpa [#allocation12], 1
    %1362 = vsyncpa [#allocation15], 1
    %1363 = vsyncpa [#allocation4], 1

</llo_original>
